<compile_context>
chip_gen: v7x
topology: tpu7x:2x2x1
jax: 0.10.0
libtpu: 0.0.40
codegen_flags: <defaults>
</compile_context>

<pallas_src>
import jax
import jax.numpy as jnp
from jax import lax
from jax.experimental import pallas as pl
from jax.experimental.pallas import tpu as pltpu


def _round_up(x, m):
    return ((x + m - 1) // m) * m


def _cdiv(a, b):
    return (a + b - 1) // b


def ncf_kernel(uid_ref, iid_ref, xt_ref,
               wu_ref, wi_ref, wt_ref, b1_ref,
               wb_ref, bb_ref, wc_ref, bc_ref,
               out_ref):
    """Fused NCF MLP for one batch tile (activations kept feature-major)."""
    TB = uid_ref.shape[1]
    U = wu_ref.shape[1]
    I = wi_ref.shape[1]

    # In-kernel embedding "gather" as one-hot matmuls on the MXU.  The tables
    # were folded (exactly) into the first layer, so these directly produce
    # layer-1 partial activations of shape (64, TB).
    uid = uid_ref[...]                                         # (1, TB) int32
    iid = iid_ref[...]                                         # (1, TB) int32
    oh_u = jnp.where(
        lax.broadcasted_iota(jnp.int32, (U, TB), 0) == uid, 1.0, 0.0)  # (U, TB)
    oh_i = jnp.where(
        lax.broadcasted_iota(jnp.int32, (I, TB), 0) == iid, 1.0, 0.0)  # (I, TB)

    # Layer 1 (user_embedding2 Linear folded with net[0] Linear) + ReLU.
    # item_types arrives batch-major (TB, F); contract on F directly
    # (q @ k^T-style dot_general) so no HBM or in-kernel transpose is needed.
    h1 = (jnp.dot(wu_ref[...], oh_u, preferred_element_type=jnp.float32)
          + jnp.dot(wi_ref[...], oh_i, preferred_element_type=jnp.float32)
          + jnp.einsum("of,bf->ob", wt_ref[...], xt_ref[...],
                       preferred_element_type=jnp.float32)
          + b1_ref[...])                                       # (64, TB)
    h1 = jnp.maximum(h1, 0.0)

    # net[2] Linear(64 -> 32) + ReLU.
    h2 = jnp.dot(wb_ref[...], h1, preferred_element_type=jnp.float32) + bb_ref[...]
    h2 = jnp.maximum(h2, 0.0)                                  # (32, TB)

    # net[4] Linear(32 -> 1): VPU multiply + cross-sublane reduce -> lane-dense
    # (1, TB) output row, then sigmoid.
    logits = jnp.sum(h2 * wc_ref[...], axis=0, keepdims=True) + bc_ref[...]
    out_ref[...] = jax.nn.sigmoid(logits)                      # (1, TB)


def prepare_kernel_params(params):
    """One-time, exact algebraic fold of torch-layout params into kernel layout."""
    F = params["user_emb_table"].shape[1]
    E = params["item_emb_table"].shape[1]
    hi = jax.lax.Precision.HIGHEST

    wa_u = params["Wa"][:, :E]                      # (64, E)
    wa_i = params["Wa"][:, E:]                      # (64, E)
    w2_u = params["W2"][:, :F]                      # (E, F)
    w2_t = params["W2"][:, F:]                      # (E, F)

    wu = jnp.dot(jnp.dot(wa_u, w2_u, precision=hi),
                 params["user_emb_table"].T, precision=hi)       # (64, user_num)
    wi = jnp.dot(wa_i, params["item_emb_table"].T, precision=hi)  # (64, item_num)
    wt = jnp.dot(wa_u, w2_t, precision=hi)                        # (64, F)
    b1 = (jnp.dot(wa_u, params["b2"], precision=hi)
          + params["ba"]).reshape(-1, 1)                          # (64, 1)

    return {
        "wu": wu, "wi": wi, "wt": wt, "b1": b1,
        "wb": params["Wb"],                   # (32, 64)
        "bb": params["bb"].reshape(-1, 1),    # (32, 1)
        "wc": params["Wc"].reshape(-1, 1),    # (32, 1)
        "bc": params["bc"].reshape(1, 1),     # (1, 1)
    }


def _choose_tile(batch, block_batch):
    """Tile multiple of 128, >=2 grid steps when possible (v7x megacore),
    padding waste bounded by ~one tile-rounding instead of a full max tile."""
    b128 = _round_up(max(batch, 1), 128)
    min_steps = 2 if b128 >= 256 else 1
    steps = max(min_steps, _cdiv(b128, block_batch))
    tb = _round_up(_cdiv(b128, steps), 128)
    steps = _cdiv(b128, tb)
    return tb, steps * tb


def ncf_forward(user_input, item_input, item_types, kparams, *, block_batch=16384):
    """Full NCF forward. Everything (gather + MLP + sigmoid) runs in the kernel."""
    B = user_input.shape[0]
    F = item_types.shape[1]
    U = kparams["wu"].shape[1]
    I = kparams["wi"].shape[1]

    TB, B_pad = _choose_tile(B, block_batch)
    pad = B_pad - B

    uid = jnp.asarray(user_input, jnp.int32)
    iid = jnp.asarray(item_input, jnp.int32)
    xt = jnp.asarray(item_types, jnp.float32)
    if pad:
        uid = jnp.pad(uid, (0, pad))              # index-0 padding: rows sliced off
        iid = jnp.pad(iid, (0, pad))
        xt = jnp.pad(xt, ((0, pad), (0, 0)))
    uid = uid.reshape(1, B_pad)                   # lane-dense index rows
    iid = iid.reshape(1, B_pad)

    grid = (B_pad // TB,)

    def const_spec(arr):
        # Constant block index -> weight stays VMEM-resident across grid steps.
        return pl.BlockSpec(arr.shape, lambda i: (0, 0))

    weight_names = ("wu", "wi", "wt", "b1", "wb", "bb", "wc", "bc")
    weights = [kparams[n] for n in weight_names]
    weight_bytes = sum(int(w.size) * 4 for w in weights)

    # VMEM budget from the actual footprint: double-buffered streamed tiles,
    # resident weights, a conservative bound on the in-kernel f32
    # intermediates (one-hots, h1, h2), plus headroom for Mosaic scratch.
    io_bytes = 2 * TB * (4 + 4 + 4 * F + 4)
    live_bytes = TB * 4 * (U + I + F + 2 * 64 + 2 * 32 + 8)
    vmem_limit = int(min(64 * 1024 * 1024,
                         io_bytes + live_bytes + 2 * weight_bytes
                         + 8 * 1024 * 1024))

    out = pl.pallas_call(
        ncf_kernel,
        out_shape=jax.ShapeDtypeStruct((1, B_pad), jnp.float32),
        grid=grid,
        in_specs=[
            pl.BlockSpec((1, TB), lambda i: (0, i)),     # user indices
            pl.BlockSpec((1, TB), lambda i: (0, i)),     # item indices
            pl.BlockSpec((TB, F), lambda i: (i, 0)),     # item_types (batch-major)
        ] + [const_spec(w) for w in weights],
        out_specs=pl.BlockSpec((1, TB), lambda i: (0, i)),  # lane-dense output
        compiler_params=pltpu.CompilerParams(
            dimension_semantics=("parallel",),           # megacore on v7x
            vmem_limit_bytes=vmem_limit,
        ),
    )(uid, iid, xt, *weights)

    return out[0, :B].reshape(B, 1)


def ncf_reference(user_input, item_input, item_types, params):
    """Pure-JAX reference matching the PyTorch forward exactly (unfolded)."""
    hi = jax.lax.Precision.HIGHEST
    ue = jnp.take(params["user_emb_table"], user_input, axis=0)
    ie = jnp.take(params["item_emb_table"], item_input, axis=0)
    u_in2 = jnp.concatenate([ue, item_types], axis=-1)
    u2 = jnp.dot(u_in2, params["W2"].T, precision=hi) + params["b2"]
    v = jnp.concatenate([u2, ie], axis=-1)
    h = jnp.maximum(jnp.dot(v, params["Wa"].T, precision=hi) + params["ba"], 0.0)
    h = jnp.maximum(jnp.dot(h, params["Wb"].T, precision=hi) + params["bb"], 0.0)
    return jax.nn.sigmoid(jnp.dot(h, params["Wc"].T, precision=hi) + params["bc"])


def init_params(key, user_num, item_num, extra_feature_len, embedding_dim):
    ks = jax.random.split(key, 10)
    F, E = extra_feature_len, embedding_dim

    def u(k, shape, scale=0.1):
        return (jax.random.uniform(k, shape, jnp.float32) - 0.5) * 2.0 * scale

    return {
        "user_emb_table": u(ks[0], (user_num, F), 0.5),
        "item_emb_table": u(ks[1], (item_num, E), 0.5),
        "W2": u(ks[2], (E, 2 * F)),
        "b2": u(ks[3], (E,)),
        "Wa": u(ks[4], (64, 2 * E)),
        "ba": u(ks[5], (64,)),
        "Wb": u(ks[6], (32, 64)),
        "bb": u(ks[7], (32,)),
        "Wc": u(ks[8], (1, 32)),
        "bc": u(ks[9], (1,)),
    }


if __name__ == "__main__":
    user_num, item_num = 16, 32
    extra_feature_len, embedding_dim = 8, 32
    batch = 8

    key = jax.random.PRNGKey(0)
    kp, ku, ki, kt = jax.random.split(key, 4)

    params = init_params(kp, user_num, item_num, extra_feature_len, embedding_dim)
    kernel_params = prepare_kernel_params(params)   # one-time exact weight fold

    user_input = jax.random.randint(ku, (batch,), 0, user_num, dtype=jnp.int32)
    item_input = jax.random.randint(ki, (batch,), 0, item_num, dtype=jnp.int32)
    item_types = jax.random.uniform(kt, (batch, extra_feature_len), jnp.float32)

    fwd = jax.jit(ncf_forward)
    out = fwd(user_input, item_input, item_types, kernel_params)
    out = jax.block_until_ready(out)

    ref = ncf_reference(user_input, item_input, item_types, params)
    assert out.shape == (batch, 1)
    assert jnp.allclose(out, ref, atol=2e-5, rtol=2e-5), "mismatch vs reference"

    print("KERNEL_OK")
</pallas_src>

<mosaic_0001>
module attributes {stable_mosaic.version = 11 : i64} {
  func.func @ncf_kernel(%arg0: i32, %arg1: memref<1x128xi32, #tpu.memory_space<vmem>>, %arg2: memref<1x128xi32, #tpu.memory_space<vmem>>, %arg3: memref<128x8xf32, #tpu.memory_space<vmem>>, %arg4: memref<64x16xf32, #tpu.memory_space<vmem>>, %arg5: memref<64x32xf32, #tpu.memory_space<vmem>>, %arg6: memref<64x8xf32, #tpu.memory_space<vmem>>, %arg7: memref<64x1xf32, #tpu.memory_space<vmem>>, %arg8: memref<32x64xf32, #tpu.memory_space<vmem>>, %arg9: memref<32x1xf32, #tpu.memory_space<vmem>>, %arg10: memref<32x1xf32, #tpu.memory_space<vmem>>, %arg11: memref<1x1xf32, #tpu.memory_space<vmem>>, %arg12: memref<1x128xf32, #tpu.memory_space<vmem>>) attributes {dimension_semantics = [#tpu.dimension_semantics<parallel>], iteration_bounds = array<i64: 1>, scalar_prefetch = 0 : i64, scratch_operands = 0 : i64, tpu.core_type = #tpu.core_type<tc>, window_params = [{transform_indices = @transform_0, window_bounds = array<i64: 1, 128>}, {transform_indices = @transform_1, window_bounds = array<i64: 1, 128>}, {transform_indices = @transform_2, window_bounds = array<i64: 128, 8>}, {pipeline_mode = #tpu.pipeline_mode<synchronous>, transform_indices = @transform_3, window_bounds = array<i64: 64, 16>}, {pipeline_mode = #tpu.pipeline_mode<synchronous>, transform_indices = @transform_4, window_bounds = array<i64: 64, 32>}, {pipeline_mode = #tpu.pipeline_mode<synchronous>, transform_indices = @transform_5, window_bounds = array<i64: 64, 8>}, {pipeline_mode = #tpu.pipeline_mode<synchronous>, transform_indices = @transform_6, window_bounds = array<i64: 64, 1>}, {pipeline_mode = #tpu.pipeline_mode<synchronous>, transform_indices = @transform_7, window_bounds = array<i64: 32, 64>}, {pipeline_mode = #tpu.pipeline_mode<synchronous>, transform_indices = @transform_8, window_bounds = array<i64: 32, 1>}, {pipeline_mode = #tpu.pipeline_mode<synchronous>, transform_indices = @transform_9, window_bounds = array<i64: 32, 1>}, {pipeline_mode = #tpu.pipeline_mode<synchronous>, transform_indices = @transform_10, window_bounds = array<i64: 1, 1>}, {transform_indices = @transform_11, window_bounds = array<i64: 1, 128>}]} {
    %c0 = arith.constant 0 : index
    %c0_0 = arith.constant 0 : index
    %0 = vector.load %arg1[%c0, %c0_0] : memref<1x128xi32, #tpu.memory_space<vmem>>, vector<1x128xi32>
    %c0_1 = arith.constant 0 : index
    %c0_2 = arith.constant 0 : index
    %1 = vector.load %arg2[%c0_1, %c0_2] : memref<1x128xi32, #tpu.memory_space<vmem>>, vector<1x128xi32>
    %2 = tpu.iota {dimensions = array<i32: 0>} : vector<16x128xi32>
    %3 = vector.broadcast %0 : vector<1x128xi32> to vector<16x128xi32>
    %4 = arith.cmpi eq, %2, %3 : vector<16x128xi32>
    %cst = arith.constant 1.000000e+00 : f32
    %cst_3 = arith.constant 0.000000e+00 : f32
    %5 = vector.broadcast %cst : f32 to vector<16x128xf32>
    %6 = vector.broadcast %cst_3 : f32 to vector<16x128xf32>
    %7 = arith.select %4, %5, %6 : vector<16x128xi1>, vector<16x128xf32>
    %8 = tpu.iota {dimensions = array<i32: 0>} : vector<32x128xi32>
    %9 = vector.broadcast %1 : vector<1x128xi32> to vector<32x128xi32>
    %10 = arith.cmpi eq, %8, %9 : vector<32x128xi32>
    %cst_4 = arith.constant 1.000000e+00 : f32
    %cst_5 = arith.constant 0.000000e+00 : f32
    %11 = vector.broadcast %cst_4 : f32 to vector<32x128xf32>
    %12 = vector.broadcast %cst_5 : f32 to vector<32x128xf32>
    %13 = arith.select %10, %11, %12 : vector<32x128xi1>, vector<32x128xf32>
    %c0_6 = arith.constant 0 : index
    %c0_7 = arith.constant 0 : index
    %14 = vector.load %arg4[%c0_6, %c0_7] : memref<64x16xf32, #tpu.memory_space<vmem>>, vector<64x16xf32>
    %cst_8 = arith.constant dense<0.000000e+00> : vector<64x128xf32>
    %15 = tpu.matmul %14, %7, %cst_8 {dimension_numbers = #tpu.dot_dimension_numbers<[1], [0], [0], [1], [0, 0, 1, 1], [], []>} : vector<64x16xf32>, vector<16x128xf32>, vector<64x128xf32> -> vector<64x128xf32>
    %c0_9 = arith.constant 0 : index
    %c0_10 = arith.constant 0 : index
    %16 = vector.load %arg5[%c0_9, %c0_10] : memref<64x32xf32, #tpu.memory_space<vmem>>, vector<64x32xf32>
    %cst_11 = arith.constant dense<0.000000e+00> : vector<64x128xf32>
    %17 = tpu.matmul %16, %13, %cst_11 {dimension_numbers = #tpu.dot_dimension_numbers<[1], [0], [0], [1], [0, 0, 1, 1], [], []>} : vector<64x32xf32>, vector<32x128xf32>, vector<64x128xf32> -> vector<64x128xf32>
    %18 = arith.addf %15, %17 : vector<64x128xf32>
    %c0_12 = arith.constant 0 : index
    %c0_13 = arith.constant 0 : index
    %19 = vector.load %arg6[%c0_12, %c0_13] : memref<64x8xf32, #tpu.memory_space<vmem>>, vector<64x8xf32>
    %c0_14 = arith.constant 0 : index
    %c0_15 = arith.constant 0 : index
    %20 = vector.load %arg3[%c0_14, %c0_15] : memref<128x8xf32, #tpu.memory_space<vmem>>, vector<128x8xf32>
    "tpu.trace_start"() <{level = 10 : i32, message = "of,bf->ob"}> : () -> ()
    %cst_16 = arith.constant dense<0.000000e+00> : vector<64x128xf32>
    %21 = tpu.matmul %19, %20, %cst_16 {dimension_numbers = #tpu.dot_dimension_numbers<[1], [1], [0], [0], [0, 0, 1, 0], [], []>} : vector<64x8xf32>, vector<128x8xf32>, vector<64x128xf32> -> vector<64x128xf32>
    "tpu.trace_stop"() : () -> ()
    %22 = arith.addf %18, %21 : vector<64x128xf32>
    %c0_17 = arith.constant 0 : index
    %c0_18 = arith.constant 0 : index
    %23 = vector.load %arg7[%c0_17, %c0_18] : memref<64x1xf32, #tpu.memory_space<vmem>>, vector<64x1xf32>
    %24 = vector.broadcast %23 : vector<64x1xf32> to vector<64x128xf32>
    %25 = arith.addf %22, %24 : vector<64x128xf32>
    %cst_19 = arith.constant 0.000000e+00 : f32
    %26 = vector.broadcast %cst_19 : f32 to vector<64x128xf32>
    %27 = arith.maximumf %25, %26 : vector<64x128xf32>
    %c0_20 = arith.constant 0 : index
    %c0_21 = arith.constant 0 : index
    %28 = vector.load %arg8[%c0_20, %c0_21] : memref<32x64xf32, #tpu.memory_space<vmem>>, vector<32x64xf32>
    %cst_22 = arith.constant dense<0.000000e+00> : vector<32x128xf32>
    %29 = tpu.matmul %28, %27, %cst_22 {dimension_numbers = #tpu.dot_dimension_numbers<[1], [0], [0], [1], [0, 0, 1, 1], [], []>} : vector<32x64xf32>, vector<64x128xf32>, vector<32x128xf32> -> vector<32x128xf32>
    %c0_23 = arith.constant 0 : index
    %c0_24 = arith.constant 0 : index
    %30 = vector.load %arg9[%c0_23, %c0_24] : memref<32x1xf32, #tpu.memory_space<vmem>>, vector<32x1xf32>
    %31 = vector.broadcast %30 : vector<32x1xf32> to vector<32x128xf32>
    %32 = arith.addf %29, %31 : vector<32x128xf32>
    %cst_25 = arith.constant 0.000000e+00 : f32
    %33 = vector.broadcast %cst_25 : f32 to vector<32x128xf32>
    %34 = arith.maximumf %32, %33 : vector<32x128xf32>
    %c0_26 = arith.constant 0 : index
    %c0_27 = arith.constant 0 : index
    %35 = vector.load %arg10[%c0_26, %c0_27] : memref<32x1xf32, #tpu.memory_space<vmem>>, vector<32x1xf32>
    %36 = vector.broadcast %35 : vector<32x1xf32> to vector<32x128xf32>
    %37 = arith.mulf %34, %36 : vector<32x128xf32>
    %cst_28 = arith.constant dense<0.000000e+00> : vector<128xf32>
    %38 = vector.multi_reduction <add>, %37, %cst_28 [0] : vector<32x128xf32> to vector<128xf32>
    %39 = vector.shape_cast %38 : vector<128xf32> to vector<1x128xf32>
    %c0_29 = arith.constant 0 : index
    %c0_30 = arith.constant 0 : index
    %40 = vector.load %arg11[%c0_29, %c0_30] : memref<1x1xf32, #tpu.memory_space<vmem>>, vector<1x1xf32>
    %41 = vector.broadcast %40 : vector<1x1xf32> to vector<1x128xf32>
    %42 = arith.addf %39, %41 : vector<1x128xf32>
    %43 = arith.negf %42 : vector<1x128xf32>
    %44 = math.exp %43 : vector<1x128xf32>
    %cst_31 = arith.constant 1.000000e+00 : f32
    %45 = vector.broadcast %cst_31 : f32 to vector<1x128xf32>
    %46 = arith.addf %45, %44 : vector<1x128xf32>
    %47 = arith.divf %45, %46 : vector<1x128xf32>
    %c0_32 = arith.constant 0 : index
    %c0_33 = arith.constant 0 : index
    %48 = vector.load %arg12[%c0_32, %c0_33] : memref<1x128xf32, #tpu.memory_space<vmem>>, vector<1x128xf32>
    tpu.vector_store %arg12[%c0_32, %c0_33], %47 {strides = array<i32>} : memref<1x128xf32, #tpu.memory_space<vmem>>, vector<1x128xf32>,
    return
  }
  func.func @transform_0(%arg0: i32) -> (i32, i32) {
    %c0_i32 = arith.constant 0 : i32
    %c0_i32_0 = arith.constant 0 : i32
    return %c0_i32, %arg0 : i32, i32
  }
  func.func @transform_1(%arg0: i32) -> (i32, i32) {
    %c0_i32 = arith.constant 0 : i32
    %c0_i32_0 = arith.constant 0 : i32
    return %c0_i32, %arg0 : i32, i32
  }
  func.func @transform_2(%arg0: i32) -> (i32, i32) {
    %c0_i32 = arith.constant 0 : i32
    %c0_i32_0 = arith.constant 0 : i32
    return %arg0, %c0_i32 : i32, i32
  }
  func.func @transform_3(%arg0: i32) -> (i32, i32) {
    %c0_i32 = arith.constant 0 : i32
    %c0_i32_0 = arith.constant 0 : i32
    %c0_i32_1 = arith.constant 0 : i32
    return %c0_i32, %c0_i32_0 : i32, i32
  }
  func.func @transform_4(%arg0: i32) -> (i32, i32) {
    %c0_i32 = arith.constant 0 : i32
    %c0_i32_0 = arith.constant 0 : i32
    %c0_i32_1 = arith.constant 0 : i32
    return %c0_i32, %c0_i32_0 : i32, i32
  }
  func.func @transform_5(%arg0: i32) -> (i32, i32) {
    %c0_i32 = arith.constant 0 : i32
    %c0_i32_0 = arith.constant 0 : i32
    %c0_i32_1 = arith.constant 0 : i32
    return %c0_i32, %c0_i32_0 : i32, i32
  }
  func.func @transform_6(%arg0: i32) -> (i32, i32) {
    %c0_i32 = arith.constant 0 : i32
    %c0_i32_0 = arith.constant 0 : i32
    %c0_i32_1 = arith.constant 0 : i32
    return %c0_i32, %c0_i32_0 : i32, i32
  }
  func.func @transform_7(%arg0: i32) -> (i32, i32) {
    %c0_i32 = arith.constant 0 : i32
    %c0_i32_0 = arith.constant 0 : i32
    %c0_i32_1 = arith.constant 0 : i32
    return %c0_i32, %c0_i32_0 : i32, i32
  }
  func.func @transform_8(%arg0: i32) -> (i32, i32) {
    %c0_i32 = arith.constant 0 : i32
    %c0_i32_0 = arith.constant 0 : i32
    %c0_i32_1 = arith.constant 0 : i32
    return %c0_i32, %c0_i32_0 : i32, i32
  }
  func.func @transform_9(%arg0: i32) -> (i32, i32) {
    %c0_i32 = arith.constant 0 : i32
    %c0_i32_0 = arith.constant 0 : i32
    %c0_i32_1 = arith.constant 0 : i32
    return %c0_i32, %c0_i32_0 : i32, i32
  }
  func.func @transform_10(%arg0: i32) -> (i32, i32) {
    %c0_i32 = arith.constant 0 : i32
    %c0_i32_0 = arith.constant 0 : i32
    %c0_i32_1 = arith.constant 0 : i32
    return %c0_i32, %c0_i32_0 : i32, i32
  }
  func.func @transform_11(%arg0: i32) -> (i32, i32) {
    %c0_i32 = arith.constant 0 : i32
    %c0_i32_0 = arith.constant 0 : i32
    return %c0_i32, %arg0 : i32, i32
  }
}

</mosaic_0001>

<llo_original>
// kernel: ncf_forward.1
$region0: #{ncf_forward.1}
  #allocation0 [shape = 'u32[]', space=smem, size = 0x4, offset = 0x4, fixed_abs, tag = 'smem constant byte address 0x4 - core index']
  #allocation1 [shape = 'u32[144,128]{1,0:T(1,128)}', space=vmem, size = 0x12000, scoped, tag = 'internal scratch']
  #allocation2 [shape = 'f32[1,1]{1,0:T(1,128)S(1)}', space=vmem, size = 0x200, scoped, tag = 'scoped memory for ncf_forward.1']
  %s0 = inlined_call_operand.vmem [shape: s32[1,128], index: 0, kind: input, shape index: {}]
  %s1 = inlined_call_operand.vmem [shape: s32[1,128], index: 1, kind: input, shape index: {}]
  %s2 = inlined_call_operand.vmem [shape: f32[128,8], index: 2, kind: input, shape index: {}]
  %s3 = inlined_call_operand.vmem [shape: f32[64,16], index: 3, kind: input, shape index: {}]
  %s4 = inlined_call_operand.vmem [shape: f32[64,32], index: 4, kind: input, shape index: {}]
  %s5 = inlined_call_operand.vmem [shape: f32[64,8], index: 5, kind: input, shape index: {}]
  %s6 = inlined_call_operand.vmem [shape: f32[64,1], index: 6, kind: input, shape index: {}]
  %s7 = inlined_call_operand.vmem [shape: f32[32,64], index: 7, kind: input, shape index: {}]
  %s8 = inlined_call_operand.vmem [shape: f32[32,1], index: 8, kind: input, shape index: {}]
  %s9 = inlined_call_operand.vmem [shape: f32[32,1], index: 9, kind: input, shape index: {}]
  %s10 = inlined_call_operand.<no memory space> [shape: f32[1,1], index: 10, kind: input, shape index: {}]
  %s11 = inlined_call_operand.vmem [shape: f32[1,128], index: 11, kind: output, shape index: {}]
  %s12 = sld [smem:[#allocation0]]
  $region54: #{ncf_forward.1} parent=0
    _
  %s14 = ssub.s32 1, %s12
  %s15 = scalar_select 0, %s14, %s12
  %v16 = vstv %s10
  %17 = vst [vmem:[#allocation2] sm:$0x1] %v16
  // Predicated region
  $region2: #{ncf_forward.1} parent=0 // pred_check
    _
  $region3: #{ncf_forward.1} parent=0 // pred_check_branch
    %19 = sbr.rel (0) target = $region5
  $region4: #{ncf_forward.1} parent=0 // pred_region
    _
  $region5: #{ncf_forward.1} parent=0 // pred_fallthru
    _
  // Predicated region
  $region6: #{ncf_forward.1} parent=0 // pred_check
    _
  $region7: #{ncf_forward.1} parent=0 // pred_check_branch
    %21 = sbr.rel (0) target = $region9
  $region8: #{ncf_forward.1} parent=0 // pred_region
    _
  $region9: #{ncf_forward.1} parent=0 // pred_fallthru
    _
  // Predicated region
  $region10: #{ncf_forward.1} parent=0 // pred_check
    _
  $region11: #{ncf_forward.1} parent=0 // pred_check_branch
    %23 = sbr.rel (0) target = $region13
  $region12: #{ncf_forward.1} parent=0 // pred_region
    _
  $region13: #{ncf_forward.1} parent=0 // pred_fallthru
    _
  // Predicated region
  $region14: #{ncf_forward.1} parent=0 // pred_check
    _
  $region15: #{ncf_forward.1} parent=0 // pred_check_branch
    %25 = sbr.rel (0) target = $region17
  $region16: #{ncf_forward.1} parent=0 // pred_region
    _
  $region17: #{ncf_forward.1} parent=0 // pred_fallthru
    _
  // Predicated region
  $region18: #{ncf_forward.1} parent=0 // pred_check
    _
  $region19: #{ncf_forward.1} parent=0 // pred_check_branch
    %27 = sbr.rel (0) target = $region21
  $region20: #{ncf_forward.1} parent=0 // pred_region
    _
  $region21: #{ncf_forward.1} parent=0 // pred_fallthru
    _
  // Predicated region
  $region22: #{ncf_forward.1} parent=0 // pred_check
    _
  $region23: #{ncf_forward.1} parent=0 // pred_check_branch
    %29 = sbr.rel (0) target = $region25
  $region24: #{ncf_forward.1} parent=0 // pred_region
    _
  $region25: #{ncf_forward.1} parent=0 // pred_fallthru
    _
  // Predicated region
  $region26: #{ncf_forward.1} parent=0 // pred_check
    _
  $region27: #{ncf_forward.1} parent=0 // pred_check_branch
    %31 = sbr.rel (0) target = $region29
  $region28: #{ncf_forward.1} parent=0 // pred_region
    _
  $region29: #{ncf_forward.1} parent=0 // pred_fallthru
    _
  // Predicated region
  $region30: #{ncf_forward.1} parent=0 // pred_check
    _
  $region31: #{ncf_forward.1} parent=0 // pred_check_branch
    %33 = sbr.rel (0) target = $region33
  $region32: #{ncf_forward.1} parent=0 // pred_region
    _
  $region33: #{ncf_forward.1} parent=0 // pred_fallthru
    _
  // Predicated region
  $region34: #{ncf_forward.1} parent=0 // pred_check
    _
  $region35: #{ncf_forward.1} parent=0 // pred_check_branch
    %35 = sbr.rel (0) target = $region37
  $region36: #{ncf_forward.1} parent=0 // pred_region
    _
  $region37: #{ncf_forward.1} parent=0 // pred_fallthru
    _
  // Predicated region
  $region38: #{ncf_forward.1} parent=0 // pred_check
    _
  $region39: #{ncf_forward.1} parent=0 // pred_check_branch
    %37 = sbr.rel (0) target = $region41
  $region40: #{ncf_forward.1} parent=0 // pred_region
    _
  $region41: #{ncf_forward.1} parent=0 // pred_fallthru
    _
  // Predicated region
  $region42: #{ncf_forward.1} parent=0 // pred_check
    _
  $region43: #{ncf_forward.1} parent=0 // pred_check_branch
    %39 = sbr.rel (0) target = $region45
  $region44: #{ncf_forward.1} parent=0 // pred_region
    _
  $region45: #{ncf_forward.1} parent=0 // pred_fallthru
    _
  %v40 = vld [vmem:[%s0] sm:$0x1]
  %v41 = vld [vmem:[%s1] sm:$0x1]
  %v42 = vlaneseq
  %v43 = vshrl.u32 %v42, 7
  %v44 = vadd.s32 %v43, 8
  %v45 = vlaneseq
  %v46 = vshrl.u32 %v45, 7
  %v47 = vsub.s32 0, %v46
  %v48 = vrot.slane %v40, %v47
  %vm49 = vcmp.eq.s32.totalorder %v43, %v48
  %vm50 = vcmp.eq.s32.totalorder %v44, %v48
  %v51 = vsel %vm49, 1.0, 0.0
  %v52 = vsel %vm50, 1.0, 0.0
  %v53 = vadd.s32 %v43, 16
  %v54 = vadd.s32 %v43, 24
  %v55 = vlaneseq
  %v56 = vshrl.u32 %v55, 7
  %v57 = vsub.s32 0, %v56
  %v58 = vrot.slane %v41, %v57
  %vm59 = vcmp.eq.s32.totalorder %v43, %v58
  %vm60 = vcmp.eq.s32.totalorder %v44, %v58
  %vm61 = vcmp.eq.s32.totalorder %v53, %v58
  %vm62 = vcmp.eq.s32.totalorder %v54, %v58
  %v63 = vsel %vm59, 1.0, 0.0
  %v64 = vsel %vm60, 1.0, 0.0
  %v65 = vsel %vm61, 1.0, 0.0
  %v66 = vsel %vm62, 1.0, 0.0
  %v67 = vld [vmem:[%s3] sm:$0xff]
  %v68 = vld [vmem:[%s3 + $0x8] sm:$0xff]
  %v69 = vld [vmem:[%s3 + $0x10] sm:$0xff]
  %v70 = vld [vmem:[%s3 + $0x18] sm:$0xff]
  %v71 = vld [vmem:[%s3 + $0x20] sm:$0xff]
  %v72 = vld [vmem:[%s3 + $0x28] sm:$0xff]
  %v73 = vld [vmem:[%s3 + $0x30] sm:$0xff]
  %v74 = vld [vmem:[%s3 + $0x38] sm:$0xff]
  %v75 = vld [vmem:[%s4] sm:$0xff]
  %v76 = vld [vmem:[%s4 + $0x8] sm:$0xff]
  %v77 = vld [vmem:[%s4 + $0x10] sm:$0xff]
  %v78 = vld [vmem:[%s4 + $0x18] sm:$0xff]
  %v79 = vld [vmem:[%s4 + $0x20] sm:$0xff]
  %v80 = vld [vmem:[%s4 + $0x28] sm:$0xff]
  %v81 = vld [vmem:[%s4 + $0x30] sm:$0xff]
  %v82 = vld [vmem:[%s4 + $0x38] sm:$0xff]
  %vm83 = vcmask 261120
  %v85 = vsel %vm83, %v75, 0
  %v88 = vsel %vm83, %v76, 0
  %v91 = vsel %vm83, %v77, 0
  %v94 = vsel %vm83, %v78, 0
  %v97 = vsel %vm83, %v79, 0
  %v100 = vsel %vm83, %v80, 0
  %v103 = vsel %vm83, %v81, 0
  %v106 = vsel %vm83, %v82, 0
  %108 = vmatprep.subr.mxu0 0.0
  %109 = vmatpush1.msra.mxu0 %v63
  %110 = vmatprep.subr.mxu0 0.0
  %111 = vmatpush1.msra.mxu0 %v64
  %112 = vmatprep.subr.mxu0 0.0
  %113 = vmatpush1.msra.mxu0 %v65
  %114 = vmatprep.subr.mxu0 0.0
  %115 = vmatpush1.msra.mxu0 %v66
  %116 = vmatprep.subr.mxu0 0.0
  %117 = vmatpush1.msra.mxu0 0.0
  %118 = vmatprep.subr.mxu0 0.0
  %119 = vmatpush1.msra.mxu0 0.0
  %120 = vmatprep.subr.mxu0 0.0
  %121 = vmatpush1.msra.mxu0 0.0
  %122 = vmatprep.subr.mxu0 0.0
  %123 = vmatpush1.msra.mxu0 0.0
  %124 = vmatprep.subr.mxu0 0.0
  %125 = vmatpush1.msra.mxu0 0.0
  %126 = vmatprep.subr.mxu0 0.0
  %127 = vmatpush1.msra.mxu0 0.0
  %128 = vmatprep.subr.mxu0 0.0
  %129 = vmatpush1.msra.mxu0 0.0
  %130 = vmatprep.subr.mxu0 0.0
  %131 = vmatpush1.msra.mxu0 0.0
  %132 = vmatprep.subr.mxu0 0.0
  %133 = vmatpush1.msra.mxu0 0.0
  %134 = vmatprep.subr.mxu0 0.0
  %135 = vmatpush1.msra.mxu0 0.0
  %136 = vmatprep.subr.mxu0 0.0
  %137 = vmatpush1.msra.mxu0 0.0
  %138 = vmatprep.subr.mxu0 0.0
  %139 = vmatpush1.msra.mxu0 0.0
  %140 = vmatprep.subr.mxu0 0.0
  %141 = vmatpush1.msra.mxu0 0.0
  %142 = vmatprep.subr.mxu0 0.0
  %143 = vmatpush1.msra.mxu0 0.0
  %144 = vmatprep.subr.mxu0 0.0
  %145 = vmatpush1.msra.mxu0 0.0
  %146 = vmatprep.subr.mxu0 0.0
  %147 = vmatpush1.msra.mxu0 0.0
  %148 = vmatprep.subr.mxu0 0.0
  %149 = vmatpush1.msra.mxu0 0.0
  %150 = vmatprep.subr.mxu0 0.0
  %151 = vmatpush1.msra.mxu0 0.0
  %152 = vmatprep.subr.mxu0 0.0
  %153 = vmatpush1.msra.mxu0 0.0
  %154 = vmatprep.subr.mxu0 0.0
  %155 = vmatpush1.msra.mxu0 0.0
  %156 = vmatprep.subr.mxu0 0.0
  %157 = vmatpush1.msra.mxu0 0.0
  %158 = vmatprep.subr.mxu0 0.0
  %159 = vmatpush1.msra.mxu0 0.0
  %160 = vmatprep.subr.mxu0 0.0
  %161 = vmatpush1.msra.mxu0 0.0
  %162 = vmatprep.subr.mxu0 0.0
  %163 = vmatpush1.msra.mxu0 0.0
  %164 = vmatprep.subr.mxu0 0.0
  %165 = vmatpush1.msra.mxu0 0.0
  %166 = vmatprep.subr.mxu0 0.0
  %167 = vmatpush1.msra.mxu0 0.0
  %168 = vmatprep.subr.mxu0 0.0
  %169 = vmatpush1.msra.mxu0 0.0
  %170 = vmatprep.subr.mxu0 0.0
  %171 = vmatpush1.msra.mxu0 0.0
  %172 = vmatprep.mubr.f32.mxu0 0.0
  %173 = vmatmul.mubr.f32.gmra.mrb[0].mxu0 %v85
  %v174 = vpop.f32.mrb[0].mxu0
  %v175 = vadd.f32 0.0, %v174
  %v176 = vpop.f32.mrb[0].mxu0
  %177 = vmatprep.mubr.f32.mxu0 0.0
  %178 = vmatmul.mubr.f32.gmra.mrb[0].mxu0 %v88
  %v179 = vpop.f32.mrb[0].mxu0
  %v180 = vadd.f32 0.0, %v179
  %v181 = vpop.f32.mrb[0].mxu0
  %182 = vmatprep.mubr.f32.mxu0 0.0
  %183 = vmatmul.mubr.f32.gmra.mrb[0].mxu0 %v91
  %v184 = vpop.f32.mrb[0].mxu0
  %v185 = vadd.f32 0.0, %v184
  %v186 = vpop.f32.mrb[0].mxu0
  %187 = vmatprep.mubr.f32.mxu0 0.0
  %188 = vmatmul.mubr.f32.gmra.mrb[0].mxu0 %v94
  %v189 = vpop.f32.mrb[0].mxu0
  %v190 = vadd.f32 0.0, %v189
  %v191 = vpop.f32.mrb[0].mxu0
  %192 = vmatprep.mubr.f32.mxu0 0.0
  %193 = vmatmul.mubr.f32.gmra.mrb[0].mxu0 %v97
  %v194 = vpop.f32.mrb[0].mxu0
  %v195 = vadd.f32 0.0, %v194
  %v196 = vpop.f32.mrb[0].mxu0
  %197 = vmatprep.mubr.f32.mxu0 0.0
  %198 = vmatmul.mubr.f32.gmra.mrb[0].mxu0 %v100
  %v199 = vpop.f32.mrb[0].mxu0
  %v200 = vadd.f32 0.0, %v199
  %v201 = vpop.f32.mrb[0].mxu0
  %202 = vmatprep.mubr.f32.mxu0 0.0
  %203 = vmatmul.mubr.f32.gmra.mrb[0].mxu0 %v103
  %v204 = vpop.f32.mrb[0].mxu0
  %v205 = vadd.f32 0.0, %v204
  %v206 = vpop.f32.mrb[0].mxu0
  %207 = vmatprep.mubr.f32.mxu0 0.0
  %208 = vmatmul.mubr.f32.gmra.mrb[0].mxu0 %v106
  %v209 = vpop.f32.mrb[0].mxu0
  %v210 = vadd.f32 0.0, %v209
  %v211 = vpop.f32.mrb[0].mxu0
  %212 = vdwg.mxu0
  %vm213 = vcmask 130048
  %v215 = vsel %vm213, %v67, 0
  %v218 = vsel %vm213, %v68, 0
  %v221 = vsel %vm213, %v69, 0
  %v224 = vsel %vm213, %v70, 0
  %v227 = vsel %vm213, %v71, 0
  %v230 = vsel %vm213, %v72, 0
  %v233 = vsel %vm213, %v73, 0
  %v236 = vsel %vm213, %v74, 0
  %238 = vmatprep.subr.mxu0 0.0
  %239 = vmatpush1.msra.mxu0 %v51
  %240 = vmatprep.subr.mxu0 0.0
  %241 = vmatpush1.msra.mxu0 %v52
  %242 = vmatprep.subr.mxu0 0.0
  %243 = vmatpush1.msra.mxu0 0.0
  %244 = vmatprep.subr.mxu0 0.0
  %245 = vmatpush1.msra.mxu0 0.0
  %246 = vmatprep.subr.mxu0 0.0
  %247 = vmatpush1.msra.mxu0 0.0
  %248 = vmatprep.subr.mxu0 0.0
  %249 = vmatpush1.msra.mxu0 0.0
  %250 = vmatprep.subr.mxu0 0.0
  %251 = vmatpush1.msra.mxu0 0.0
  %252 = vmatprep.subr.mxu0 0.0
  %253 = vmatpush1.msra.mxu0 0.0
  %254 = vmatprep.subr.mxu0 0.0
  %255 = vmatpush1.msra.mxu0 0.0
  %256 = vmatprep.subr.mxu0 0.0
  %257 = vmatpush1.msra.mxu0 0.0
  %258 = vmatprep.subr.mxu0 0.0
  %259 = vmatpush1.msra.mxu0 0.0
  %260 = vmatprep.subr.mxu0 0.0
  %261 = vmatpush1.msra.mxu0 0.0
  %262 = vmatprep.subr.mxu0 0.0
  %263 = vmatpush1.msra.mxu0 0.0
  %264 = vmatprep.subr.mxu0 0.0
  %265 = vmatpush1.msra.mxu0 0.0
  %266 = vmatprep.subr.mxu0 0.0
  %267 = vmatpush1.msra.mxu0 0.0
  %268 = vmatprep.subr.mxu0 0.0
  %269 = vmatpush1.msra.mxu0 0.0
  %270 = vmatprep.subr.mxu0 0.0
  %271 = vmatpush1.msra.mxu0 0.0
  %272 = vmatprep.subr.mxu0 0.0
  %273 = vmatpush1.msra.mxu0 0.0
  %274 = vmatprep.subr.mxu0 0.0
  %275 = vmatpush1.msra.mxu0 0.0
  %276 = vmatprep.subr.mxu0 0.0
  %277 = vmatpush1.msra.mxu0 0.0
  %278 = vmatprep.subr.mxu0 0.0
  %279 = vmatpush1.msra.mxu0 0.0
  %280 = vmatprep.subr.mxu0 0.0
  %281 = vmatpush1.msra.mxu0 0.0
  %282 = vmatprep.subr.mxu0 0.0
  %283 = vmatpush1.msra.mxu0 0.0
  %284 = vmatprep.subr.mxu0 0.0
  %285 = vmatpush1.msra.mxu0 0.0
  %286 = vmatprep.subr.mxu0 0.0
  %287 = vmatpush1.msra.mxu0 0.0
  %288 = vmatprep.subr.mxu0 0.0
  %289 = vmatpush1.msra.mxu0 0.0
  %290 = vmatprep.subr.mxu0 0.0
  %291 = vmatpush1.msra.mxu0 0.0
  %292 = vmatprep.subr.mxu0 0.0
  %293 = vmatpush1.msra.mxu0 0.0
  %294 = vmatprep.subr.mxu0 0.0
  %295 = vmatpush1.msra.mxu0 0.0
  %296 = vmatprep.subr.mxu0 0.0
  %297 = vmatpush1.msra.mxu0 0.0
  %298 = vmatprep.subr.mxu0 0.0
  %299 = vmatpush1.msra.mxu0 0.0
  %300 = vmatprep.subr.mxu0 0.0
  %301 = vmatpush1.msra.mxu0 0.0
  %302 = vmatprep.mubr.f32.mxu0 0.0
  %303 = vmatmul.mubr.f32.gmra.mrb[0].mxu0 %v215
  %v304 = vpop.f32.mrb[0].mxu0
  %v305 = vadd.f32 %v175, %v304
  %v306 = vpop.f32.mrb[0].mxu0
  %307 = vmatprep.mubr.f32.mxu0 0.0
  %308 = vmatmul.mubr.f32.gmra.mrb[0].mxu0 %v218
  %v309 = vpop.f32.mrb[0].mxu0
  %v310 = vadd.f32 %v180, %v309
  %v311 = vpop.f32.mrb[0].mxu0
  %312 = vmatprep.mubr.f32.mxu0 0.0
  %313 = vmatmul.mubr.f32.gmra.mrb[0].mxu0 %v221
  %v314 = vpop.f32.mrb[0].mxu0
  %v315 = vadd.f32 %v185, %v314
  %v316 = vpop.f32.mrb[0].mxu0
  %317 = vmatprep.mubr.f32.mxu0 0.0
  %318 = vmatmul.mubr.f32.gmra.mrb[0].mxu0 %v224
  %v319 = vpop.f32.mrb[0].mxu0
  %v320 = vadd.f32 %v190, %v319
  %v321 = vpop.f32.mrb[0].mxu0
  %322 = vmatprep.mubr.f32.mxu0 0.0
  %323 = vmatmul.mubr.f32.gmra.mrb[0].mxu0 %v227
  %v324 = vpop.f32.mrb[0].mxu0
  %v325 = vadd.f32 %v195, %v324
  %v326 = vpop.f32.mrb[0].mxu0
  %327 = vmatprep.mubr.f32.mxu0 0.0
  %328 = vmatmul.mubr.f32.gmra.mrb[0].mxu0 %v230
  %v329 = vpop.f32.mrb[0].mxu0
  %v330 = vadd.f32 %v200, %v329
  %v331 = vpop.f32.mrb[0].mxu0
  %332 = vmatprep.mubr.f32.mxu0 0.0
  %333 = vmatmul.mubr.f32.gmra.mrb[0].mxu0 %v233
  %v334 = vpop.f32.mrb[0].mxu0
  %v335 = vadd.f32 %v205, %v334
  %v336 = vpop.f32.mrb[0].mxu0
  %337 = vmatprep.mubr.f32.mxu0 0.0
  %338 = vmatmul.mubr.f32.gmra.mrb[0].mxu0 %v236
  %v339 = vpop.f32.mrb[0].mxu0
  %v340 = vadd.f32 %v210, %v339
  %v341 = vpop.f32.mrb[0].mxu0
  %342 = vdwg.mxu0
  %v343 = vld [vmem:[%s5] sm:$0xff]
  %v344 = vld [vmem:[%s5 + $0x8] sm:$0xff]
  %v345 = vld [vmem:[%s5 + $0x10] sm:$0xff]
  %v346 = vld [vmem:[%s5 + $0x18] sm:$0xff]
  %v347 = vld [vmem:[%s5 + $0x20] sm:$0xff]
  %v348 = vld [vmem:[%s5 + $0x28] sm:$0xff]
  %v349 = vld [vmem:[%s5 + $0x30] sm:$0xff]
  %v350 = vld [vmem:[%s5 + $0x38] sm:$0xff]
  %v351 = vld [vmem:[%s2] sm:$0xff]
  %v352 = vld [vmem:[%s2 + $0x8] sm:$0xff]
  %v353 = vld [vmem:[%s2 + $0x10] sm:$0xff]
  %v354 = vld [vmem:[%s2 + $0x18] sm:$0xff]
  %v355 = vld [vmem:[%s2 + $0x20] sm:$0xff]
  %v356 = vld [vmem:[%s2 + $0x28] sm:$0xff]
  %v357 = vld [vmem:[%s2 + $0x30] sm:$0xff]
  %v358 = vld [vmem:[%s2 + $0x38] sm:$0xff]
  %v359 = vld [vmem:[%s2 + $0x40] sm:$0xff]
  %v360 = vld [vmem:[%s2 + $0x48] sm:$0xff]
  %v361 = vld [vmem:[%s2 + $0x50] sm:$0xff]
  %v362 = vld [vmem:[%s2 + $0x58] sm:$0xff]
  %v363 = vld [vmem:[%s2 + $0x60] sm:$0xff]
  %v364 = vld [vmem:[%s2 + $0x68] sm:$0xff]
  %v365 = vld [vmem:[%s2 + $0x70] sm:$0xff]
  %v366 = vld [vmem:[%s2 + $0x78] sm:$0xff]
  %vm367 = vcmask 64512
  %v369 = vsel %vm367, %v343, 0
  %v372 = vsel %vm367, %v344, 0
  %v375 = vsel %vm367, %v345, 0
  %v378 = vsel %vm367, %v346, 0
  %v381 = vsel %vm367, %v347, 0
  %v384 = vsel %vm367, %v348, 0
  %v387 = vsel %vm367, %v349, 0
  %v390 = vsel %vm367, %v350, 0
  %v393 = vsel %vm367, %v351, 0
  %v396 = vsel %vm367, %v352, 0
  %v399 = vsel %vm367, %v353, 0
  %v402 = vsel %vm367, %v354, 0
  %v405 = vsel %vm367, %v355, 0
  %v408 = vsel %vm367, %v356, 0
  %v411 = vsel %vm367, %v357, 0
  %v414 = vsel %vm367, %v358, 0
  %v417 = vsel %vm367, %v359, 0
  %v420 = vsel %vm367, %v360, 0
  %v423 = vsel %vm367, %v361, 0
  %v426 = vsel %vm367, %v362, 0
  %v429 = vsel %vm367, %v363, 0
  %v432 = vsel %vm367, %v364, 0
  %v435 = vsel %vm367, %v365, 0
  %v438 = vsel %vm367, %v366, 0
  %440 = vmatprep.subr.mxu0 0.0
  %441 = vmatpush1.xpose.msra.mxu0 %v393
  %442 = vmatprep.subr.mxu0 0.0
  %443 = vmatpush1.xpose.msra.mxu0 %v396
  %444 = vmatprep.subr.mxu0 0.0
  %445 = vmatpush1.xpose.msra.mxu0 %v399
  %446 = vmatprep.subr.mxu0 0.0
  %447 = vmatpush1.xpose.msra.mxu0 %v402
  %448 = vmatprep.subr.mxu0 0.0
  %449 = vmatpush1.xpose.msra.mxu0 %v405
  %450 = vmatprep.subr.mxu0 0.0
  %451 = vmatpush1.xpose.msra.mxu0 %v408
  %452 = vmatprep.subr.mxu0 0.0
  %453 = vmatpush1.xpose.msra.mxu0 %v411
  %454 = vmatprep.subr.mxu0 0.0
  %455 = vmatpush1.xpose.msra.mxu0 %v414
  %456 = vmatprep.subr.mxu0 0.0
  %457 = vmatpush1.xpose.msra.mxu0 %v417
  %458 = vmatprep.subr.mxu0 0.0
  %459 = vmatpush1.xpose.msra.mxu0 %v420
  %460 = vmatprep.subr.mxu0 0.0
  %461 = vmatpush1.xpose.msra.mxu0 %v423
  %462 = vmatprep.subr.mxu0 0.0
  %463 = vmatpush1.xpose.msra.mxu0 %v426
  %464 = vmatprep.subr.mxu0 0.0
  %465 = vmatpush1.xpose.msra.mxu0 %v429
  %466 = vmatprep.subr.mxu0 0.0
  %467 = vmatpush1.xpose.msra.mxu0 %v432
  %468 = vmatprep.subr.mxu0 0.0
  %469 = vmatpush1.xpose.msra.mxu0 %v435
  %470 = vmatprep.subr.mxu0 0.0
  %471 = vmatpush1.xpose.msra.mxu0 %v438
  %472 = vmatprep.subr.mxu0 0.0
  %473 = vmatpush1.xpose.msra.mxu0 0.0
  %474 = vmatprep.subr.mxu0 0.0
  %475 = vmatpush1.xpose.msra.mxu0 0.0
  %476 = vmatprep.subr.mxu0 0.0
  %477 = vmatpush1.xpose.msra.mxu0 0.0
  %478 = vmatprep.subr.mxu0 0.0
  %479 = vmatpush1.xpose.msra.mxu0 0.0
  %480 = vmatprep.subr.mxu0 0.0
  %481 = vmatpush1.xpose.msra.mxu0 0.0
  %482 = vmatprep.subr.mxu0 0.0
  %483 = vmatpush1.xpose.msra.mxu0 0.0
  %484 = vmatprep.subr.mxu0 0.0
  %485 = vmatpush1.xpose.msra.mxu0 0.0
  %486 = vmatprep.subr.mxu0 0.0
  %487 = vmatpush1.xpose.msra.mxu0 0.0
  %488 = vmatprep.subr.mxu0 0.0
  %489 = vmatpush1.xpose.msra.mxu0 0.0
  %490 = vmatprep.subr.mxu0 0.0
  %491 = vmatpush1.xpose.msra.mxu0 0.0
  %492 = vmatprep.subr.mxu0 0.0
  %493 = vmatpush1.xpose.msra.mxu0 0.0
  %494 = vmatprep.subr.mxu0 0.0
  %495 = vmatpush1.xpose.msra.mxu0 0.0
  %496 = vmatprep.subr.mxu0 0.0
  %497 = vmatpush1.xpose.msra.mxu0 0.0
  %498 = vmatprep.subr.mxu0 0.0
  %499 = vmatpush1.xpose.msra.mxu0 0.0
  %500 = vmatprep.subr.mxu0 0.0
  %501 = vmatpush1.xpose.msra.mxu0 0.0
  %502 = vmatprep.subr.mxu0 0.0
  %503 = vmatpush1.xpose.msra.mxu0 0.0
  %504 = vmatprep.mubr.f32.mxu0 0.0
  %505 = vmatmul.mubr.f32.gmra.mrb[0].mxu0 %v369
  %v506 = vpop.f32.mrb[0].mxu0
  %v507 = vadd.f32 0.0, %v506
  %v508 = vpop.f32.mrb[0].mxu0
  %509 = vmatprep.mubr.f32.mxu0 0.0
  %510 = vmatmul.mubr.f32.gmra.mrb[0].mxu0 %v372
  %v511 = vpop.f32.mrb[0].mxu0
  %v512 = vadd.f32 0.0, %v511
  %v513 = vpop.f32.mrb[0].mxu0
  %514 = vmatprep.mubr.f32.mxu0 0.0
  %515 = vmatmul.mubr.f32.gmra.mrb[0].mxu0 %v375
  %v516 = vpop.f32.mrb[0].mxu0
  %v517 = vadd.f32 0.0, %v516
  %v518 = vpop.f32.mrb[0].mxu0
  %519 = vmatprep.mubr.f32.mxu0 0.0
  %520 = vmatmul.mubr.f32.gmra.mrb[0].mxu0 %v378
  %v521 = vpop.f32.mrb[0].mxu0
  %v522 = vadd.f32 0.0, %v521
  %v523 = vpop.f32.mrb[0].mxu0
  %524 = vmatprep.mubr.f32.mxu0 0.0
  %525 = vmatmul.mubr.f32.gmra.mrb[0].mxu0 %v381
  %v526 = vpop.f32.mrb[0].mxu0
  %v527 = vadd.f32 0.0, %v526
  %v528 = vpop.f32.mrb[0].mxu0
  %529 = vmatprep.mubr.f32.mxu0 0.0
  %530 = vmatmul.mubr.f32.gmra.mrb[0].mxu0 %v384
  %v531 = vpop.f32.mrb[0].mxu0
  %v532 = vadd.f32 0.0, %v531
  %v533 = vpop.f32.mrb[0].mxu0
  %534 = vmatprep.mubr.f32.mxu0 0.0
  %535 = vmatmul.mubr.f32.gmra.mrb[0].mxu0 %v387
  %v536 = vpop.f32.mrb[0].mxu0
  %v537 = vadd.f32 0.0, %v536
  %v538 = vpop.f32.mrb[0].mxu0
  %539 = vmatprep.mubr.f32.mxu0 0.0
  %540 = vmatmul.mubr.f32.gmra.mrb[0].mxu0 %v390
  %v541 = vpop.f32.mrb[0].mxu0
  %v542 = vadd.f32 0.0, %v541
  %v543 = vpop.f32.mrb[0].mxu0
  %544 = vdwg.mxu0
  %v545 = vadd.f32 %v305, %v507
  %v546 = vadd.f32 %v310, %v512
  %v547 = vadd.f32 %v315, %v517
  %v548 = vadd.f32 %v320, %v522
  %v549 = vadd.f32 %v325, %v527
  %v550 = vadd.f32 %v330, %v532
  %v551 = vadd.f32 %v335, %v537
  %v552 = vadd.f32 %v340, %v542
  %v553 = vld [vmem:[%s6] sm:$0xff]
  %v554 = vld [vmem:[%s6 + $0x8] sm:$0xff]
  %v555 = vld [vmem:[%s6 + $0x10] sm:$0xff]
  %v556 = vld [vmem:[%s6 + $0x18] sm:$0xff]
  %v557 = vld [vmem:[%s6 + $0x20] sm:$0xff]
  %v558 = vld [vmem:[%s6 + $0x28] sm:$0xff]
  %v559 = vld [vmem:[%s6 + $0x30] sm:$0xff]
  %v560 = vld [vmem:[%s6 + $0x38] sm:$0xff]
  %562 = vset.pattern.permute.xlu0 0
  %563 = vperm.xlu0 %562, %v553
  %v564 = vpop.permute.xlu0 %563
  %567 = vset.pattern.permute.xlu0 0
  %568 = vperm.xlu0 %567, %v554
  %v569 = vpop.permute.xlu0 %568
  %572 = vset.pattern.permute.xlu0 0
  %573 = vperm.xlu0 %572, %v555
  %v574 = vpop.permute.xlu0 %573
  %577 = vset.pattern.permute.xlu0 0
  %578 = vperm.xlu0 %577, %v556
  %v579 = vpop.permute.xlu0 %578
  %582 = vset.pattern.permute.xlu0 0
  %583 = vperm.xlu0 %582, %v557
  %v584 = vpop.permute.xlu0 %583
  %587 = vset.pattern.permute.xlu0 0
  %588 = vperm.xlu0 %587, %v558
  %v589 = vpop.permute.xlu0 %588
  %592 = vset.pattern.permute.xlu0 0
  %593 = vperm.xlu0 %592, %v559
  %v594 = vpop.permute.xlu0 %593
  %597 = vset.pattern.permute.xlu0 0
  %598 = vperm.xlu0 %597, %v560
  %v599 = vpop.permute.xlu0 %598
  %v601 = vadd.f32 %v545, %v564
  %v602 = vadd.f32 %v546, %v569
  %v603 = vadd.f32 %v547, %v574
  %v604 = vadd.f32 %v548, %v579
  %v605 = vadd.f32 %v549, %v584
  %v606 = vadd.f32 %v550, %v589
  %v607 = vadd.f32 %v551, %v594
  %v608 = vadd.f32 %v552, %v599
  %v609 = vmax.f32 %v601, 0.0
  %v610 = vmax.f32 %v602, 0.0
  %v611 = vmax.f32 %v603, 0.0
  %v612 = vmax.f32 %v604, 0.0
  %v613 = vmax.f32 %v605, 0.0
  %v614 = vmax.f32 %v606, 0.0
  %v615 = vmax.f32 %v607, 0.0
  %v616 = vmax.f32 %v608, 0.0
  %v617 = vld [vmem:[%s7] sm:$0xff]
  %v618 = vld [vmem:[%s7 + $0x8] sm:$0xff]
  %v619 = vld [vmem:[%s7 + $0x10] sm:$0xff]
  %v620 = vld [vmem:[%s7 + $0x18] sm:$0xff]
  %v621 = vld [vmem:[%s8] sm:$0xff]
  %v622 = vld [vmem:[%s8 + $0x8] sm:$0xff]
  %v623 = vld [vmem:[%s8 + $0x10] sm:$0xff]
  %v624 = vld [vmem:[%s8 + $0x18] sm:$0xff]
  %626 = vset.pattern.permute.xlu0 0
  %627 = vperm.xlu0 %626, %v621
  %v628 = vpop.permute.xlu0 %627
  %631 = vset.pattern.permute.xlu0 0
  %632 = vperm.xlu0 %631, %v622
  %v633 = vpop.permute.xlu0 %632
  %636 = vset.pattern.permute.xlu0 0
  %637 = vperm.xlu0 %636, %v623
  %v638 = vpop.permute.xlu0 %637
  %641 = vset.pattern.permute.xlu0 0
  %642 = vperm.xlu0 %641, %v624
  %v643 = vpop.permute.xlu0 %642
  %vm645 = vcmask 523264
  %v647 = vsel %vm645, %v617, 0
  %v650 = vsel %vm645, %v618, 0
  %v653 = vsel %vm645, %v619, 0
  %v656 = vsel %vm645, %v620, 0
  %658 = vmatprep.subr.mxu0 0.0
  %659 = vmatpush1.msra.mxu0 %v609
  %660 = vmatprep.subr.mxu0 0.0
  %661 = vmatpush1.msra.mxu0 %v610
  %662 = vmatprep.subr.mxu0 0.0
  %663 = vmatpush1.msra.mxu0 %v611
  %664 = vmatprep.subr.mxu0 0.0
  %665 = vmatpush1.msra.mxu0 %v612
  %666 = vmatprep.subr.mxu0 0.0
  %667 = vmatpush1.msra.mxu0 %v613
  %668 = vmatprep.subr.mxu0 0.0
  %669 = vmatpush1.msra.mxu0 %v614
  %670 = vmatprep.subr.mxu0 0.0
  %671 = vmatpush1.msra.mxu0 %v615
  %672 = vmatprep.subr.mxu0 0.0
  %673 = vmatpush1.msra.mxu0 %v616
  %674 = vmatprep.subr.mxu0 0.0
  %675 = vmatpush1.msra.mxu0 0.0
  %676 = vmatprep.subr.mxu0 0.0
  %677 = vmatpush1.msra.mxu0 0.0
  %678 = vmatprep.subr.mxu0 0.0
  %679 = vmatpush1.msra.mxu0 0.0
  %680 = vmatprep.subr.mxu0 0.0
  %681 = vmatpush1.msra.mxu0 0.0
  %682 = vmatprep.subr.mxu0 0.0
  %683 = vmatpush1.msra.mxu0 0.0
  %684 = vmatprep.subr.mxu0 0.0
  %685 = vmatpush1.msra.mxu0 0.0
  %686 = vmatprep.subr.mxu0 0.0
  %687 = vmatpush1.msra.mxu0 0.0
  %688 = vmatprep.subr.mxu0 0.0
  %689 = vmatpush1.msra.mxu0 0.0
  %690 = vmatprep.subr.mxu0 0.0
  %691 = vmatpush1.msra.mxu0 0.0
  %692 = vmatprep.subr.mxu0 0.0
  %693 = vmatpush1.msra.mxu0 0.0
  %694 = vmatprep.subr.mxu0 0.0
  %695 = vmatpush1.msra.mxu0 0.0
  %696 = vmatprep.subr.mxu0 0.0
  %697 = vmatpush1.msra.mxu0 0.0
  %698 = vmatprep.subr.mxu0 0.0
  %699 = vmatpush1.msra.mxu0 0.0
  %700 = vmatprep.subr.mxu0 0.0
  %701 = vmatpush1.msra.mxu0 0.0
  %702 = vmatprep.subr.mxu0 0.0
  %703 = vmatpush1.msra.mxu0 0.0
  %704 = vmatprep.subr.mxu0 0.0
  %705 = vmatpush1.msra.mxu0 0.0
  %706 = vmatprep.subr.mxu0 0.0
  %707 = vmatpush1.msra.mxu0 0.0
  %708 = vmatprep.subr.mxu0 0.0
  %709 = vmatpush1.msra.mxu0 0.0
  %710 = vmatprep.subr.mxu0 0.0
  %711 = vmatpush1.msra.mxu0 0.0
  %712 = vmatprep.subr.mxu0 0.0
  %713 = vmatpush1.msra.mxu0 0.0
  %714 = vmatprep.subr.mxu0 0.0
  %715 = vmatpush1.msra.mxu0 0.0
  %716 = vmatprep.subr.mxu0 0.0
  %717 = vmatpush1.msra.mxu0 0.0
  %718 = vmatprep.subr.mxu0 0.0
  %719 = vmatpush1.msra.mxu0 0.0
  %720 = vmatprep.subr.mxu0 0.0
  %721 = vmatpush1.msra.mxu0 0.0
  %722 = vmatprep.mubr.f32.mxu0 0.0
  %723 = vmatmul.mubr.f32.gmra.mrb[0].mxu0 %v647
  %v724 = vpop.f32.mrb[0].mxu0
  %v725 = vadd.f32 %v628, %v724
  %v726 = vpop.f32.mrb[0].mxu0
  %727 = vmatprep.mubr.f32.mxu0 0.0
  %728 = vmatmul.mubr.f32.gmra.mrb[0].mxu0 %v650
  %v729 = vpop.f32.mrb[0].mxu0
  %v730 = vadd.f32 %v633, %v729
  %v731 = vpop.f32.mrb[0].mxu0
  %732 = vmatprep.mubr.f32.mxu0 0.0
  %733 = vmatmul.mubr.f32.gmra.mrb[0].mxu0 %v653
  %v734 = vpop.f32.mrb[0].mxu0
  %v735 = vadd.f32 %v638, %v734
  %v736 = vpop.f32.mrb[0].mxu0
  %737 = vmatprep.mubr.f32.mxu0 0.0
  %738 = vmatmul.mubr.f32.gmra.mrb[0].mxu0 %v656
  %v739 = vpop.f32.mrb[0].mxu0
  %v740 = vadd.f32 %v643, %v739
  %v741 = vpop.f32.mrb[0].mxu0
  %742 = vdwg.mxu0
  %v743 = vmax.f32 %v725, 0.0
  %v744 = vmax.f32 %v730, 0.0
  %v745 = vmax.f32 %v735, 0.0
  %v746 = vmax.f32 %v740, 0.0
  %v747 = vld [vmem:[%s9] sm:$0xff]
  %v748 = vld [vmem:[%s9 + $0x8] sm:$0xff]
  %v749 = vld [vmem:[%s9 + $0x10] sm:$0xff]
  %v750 = vld [vmem:[%s9 + $0x18] sm:$0xff]
  %752 = vset.pattern.permute.xlu0 0
  %753 = vperm.xlu0 %752, %v747
  %v754 = vpop.permute.xlu0 %753
  %757 = vset.pattern.permute.xlu0 0
  %758 = vperm.xlu0 %757, %v748
  %v759 = vpop.permute.xlu0 %758
  %762 = vset.pattern.permute.xlu0 0
  %763 = vperm.xlu0 %762, %v749
  %v764 = vpop.permute.xlu0 %763
  %767 = vset.pattern.permute.xlu0 0
  %768 = vperm.xlu0 %767, %v750
  %v769 = vpop.permute.xlu0 %768
  %v771 = vmul.f32 %v743, %v754
  %v772 = vmul.f32 %v744, %v759
  %v773 = vmul.f32 %v745, %v764
  %v774 = vmul.f32 %v746, %v769
  %v775 = vadd.f32 %v771, %v772
  %v776 = vadd.f32 %v775, %v773
  %v777 = vadd.f32 %v776, %v774
  %v778 = vrot.slane %v777, 4
  %v779 = vadd.f32 %v777, %v778
  %v780 = vrot.slane %v779, 2
  %v781 = vadd.f32 %v779, %v780
  %v782 = vrot.slane %v781, 1
  %v783 = vadd.f32 %v781, %v782
  %v784 = vld [vmem:[#allocation2] sm:$0x1]
  %786 = vset.pattern.permute.xlu0 0
  %787 = vperm.xlu0 %786, %v784
  %v788 = vpop.permute.xlu0 %787
  %v790 = vlaneseq
  %v791 = vshrl.u32 %v790, 7
  %v792 = vsub.s32 0, %v791
  %v793 = vrot.slane %v788, %v792
  %v794 = vadd.f32 %v783, %v793
  %v795 = vxor.u32 %v794, 2147483648
  %v796 = vmul.f32 %v795, 1.442695
  %v797 = vpow.pop %v796
  %v798 = vadd.f32 %v797, 1.0
  %v799 = vrcp.pop %v798
  %v800 = vmul.f32 1.0, %v799
  %801 = vst [vmem:[%s11] sm:$0x1] %v800
  // Predicated region
  $region46: #{ncf_forward.1} parent=0 // pred_check
    _
  $region47: #{ncf_forward.1} parent=0 // pred_check_branch
    %803 = sbr.rel (0) target = $region49
  $region48: #{ncf_forward.1} parent=0 // pred_region
    _
  $region49: #{ncf_forward.1} parent=0 // pred_fallthru
    _
  // Predicated region
  $region50: #{ncf_forward.1} parent=0 // pred_check
    _
  $region51: #{ncf_forward.1} parent=0 // pred_check_branch
    %805 = sbr.rel (0) target = $region53
  $region52: #{ncf_forward.1} parent=0 // pred_region
    _
  $region53: #{ncf_forward.1} parent=0 // pred_fallthru
    _

</llo_original>
